<compile_context>
chip_gen: v7x
topology: tpu7x:2x2x1
jax: 0.10.0
libtpu: 0.0.40
codegen_flags: <defaults>
</compile_context>

<pallas_src>
import functools

import jax
import jax.numpy as jnp
from jax import lax
from jax.experimental import pallas as pl
from jax.experimental.pallas import tpu as pltpu


def _fused_graph_kernel(x_ref, w1_ref, b1_ref, w2_ref, b2_ref, w3_ref, b3_ref,
                        o_ref, *, valid_rows, tiles_per_core, tile_b):
    # x_ref:  (TB, D)      bf16 batch tile
    # w1_ref: (D, FFp)     bf16 fused layer-1 weight        (VMEM resident)
    # w2/w3:  (FFp, FFp)   bf16 block-diagonal weights      (VMEM resident)
    # b*_ref: (1, FFp)     f32 biases                       (VMEM resident)
    # o_ref:  (8, FFp)     f32 running batch-sum for this "partial" (resident)
    p = pl.program_id(0)
    i = pl.program_id(1)

    @pl.when(i == 0)
    def _():
        o_ref[...] = jnp.zeros_like(o_ref)

    x = x_ref[...]
    h1 = jnp.dot(x, w1_ref[...], preferred_element_type=jnp.float32) + b1_ref[...]
    h1 = jnp.maximum(h1, 0.0).astype(x.dtype)                       # ReLU, back to bf16
    h2 = jnp.dot(h1, w2_ref[...], preferred_element_type=jnp.float32) + b2_ref[...]
    h2 = jnp.maximum(h2, 0.0).astype(x.dtype)                       # ReLU, back to bf16
    h3 = jnp.dot(h2, w3_ref[...], preferred_element_type=jnp.float32) + b3_ref[...]

    # Mask batch-padding rows: zero-padded inputs still produce bias+ReLU garbage.
    row_start = (p * tiles_per_core + i) * tile_b
    row_ids = row_start + lax.broadcasted_iota(jnp.int32, h3.shape, 0)
    h3 = jnp.where(row_ids < valid_rows, h3, 0.0)

    # Sublane-dense partial reduction: (TB, FFp) -> (8, FFp); final 8-row sum in wrapper.
    o_ref[...] += jnp.sum(h3.reshape(tile_b // 8, 8, h3.shape[-1]), axis=0)


def _pick_batch_tile(batch):
    """Largest power-of-two tile (multiple of 8, <= 8192) not exceeding the padded batch."""
    padded = max(8, -(-batch // 8) * 8)
    for cand in (8192, 4096, 2048, 1024, 512, 256, 128, 64, 32, 16, 8):
        if cand <= padded:
            return cand
    return 8


def repack_params(params, compute_dtype=jnp.bfloat16):
    """One-time parameter repacking (hoist out of the per-forward hot path)."""
    W1, b1, W2, b2, W3, b3 = params
    F_ = W1.shape[0]
    Din = W1.shape[1]
    D = Din - F_
    FF = F_ * F_
    FF_pad = pl.cdiv(FF, 128) * 128          # lane-dense padded width (>= 128)

    # Fold the one-hot input into an effective layer-1 bias.
    idx = jnp.arange(F_)
    b1_eff = (b1[:, 0, :] + W1[idx, D + idx, :]).reshape(1, FF)      # (1, FF)

    # Fuse F layer-1 matmuls into a single (D, F*F) contraction:
    # column i*F + g is W1[i, :D, g].
    W1_fused = jnp.transpose(W1[:, :D, :], (1, 0, 2)).reshape(D, FF)

    # Layers 2/3 as block-diagonal (FF, FF) weights (one MXU stream each).
    eye = jnp.eye(F_, dtype=W2.dtype)
    W2_bd = jnp.einsum("ij,ifg->ifjg", eye, W2).reshape(FF, FF)
    W3_bd = jnp.einsum("ij,ifg->ifjg", eye, W3).reshape(FF, FF)
    b2_flat = b2[:, 0, :].reshape(1, FF)
    b3_flat = b3[:, 0, :].reshape(1, FF)

    # Zero-pad the lane dimension to FF_pad; padded columns stay exactly zero
    # through bias(0) + ReLU + zero weight rows, so slicing [:FF] afterwards is exact.
    pad = FF_pad - FF
    W1_p = jnp.pad(W1_fused, ((0, 0), (0, pad))).astype(compute_dtype)
    W2_p = jnp.pad(W2_bd, ((0, pad), (0, pad))).astype(compute_dtype)
    W3_p = jnp.pad(W3_bd, ((0, pad), (0, pad))).astype(compute_dtype)
    b1_p = jnp.pad(b1_eff, ((0, 0), (0, pad))).astype(jnp.float32)
    b2_p = jnp.pad(b2_flat, ((0, 0), (0, pad))).astype(jnp.float32)
    b3_p = jnp.pad(b3_flat, ((0, 0), (0, pad))).astype(jnp.float32)

    meta = dict(num_fields=F_, input_dim=D, ff=FF, ff_pad=FF_pad,
                compute_dtype=compute_dtype)
    return (W1_p, b1_p, W2_p, b2_p, W3_p, b3_p), meta


def generate_graph(feature_emb, repacked, meta, *, broadcast_to_batch=True):
    """Pallas implementation of GenerateGraph.forward.

    feature_emb: (B, num_item_fields * embedding_dim) float32
    repacked/meta: from repack_params(params)  (computed once per param update)
    returns: (B, F, F) float32 (or (F, F) if broadcast_to_batch=False; the rows
             are identical, so downstream consumers can take the mean directly
             and avoid the redundant HBM broadcast).
    """
    W1_p, b1_p, W2_p, b2_p, W3_p, b3_p = repacked
    F_ = meta["num_fields"]
    D = meta["input_dim"]
    FF = meta["ff"]
    FF_pad = meta["ff_pad"]
    cdt = meta["compute_dtype"]

    B = feature_emb.shape[0]
    assert feature_emb.shape[1] == D

    # Batch tiling: cdiv grid with a masked tail; <=2 "partials" keep both v7x TCs busy.
    TB = _pick_batch_tile(B)
    n_tiles = pl.cdiv(B, TB)
    num_partials = 2 if n_tiles >= 2 else 1
    tiles_per_core = pl.cdiv(n_tiles, num_partials)
    total_tiles = num_partials * tiles_per_core
    B_pad = total_tiles * TB

    x = feature_emb.astype(cdt)                      # halve the per-step x DMA bytes
    if B_pad != B:
        x = jnp.pad(x, ((0, B_pad - B), (0, 0)))

    kernel = functools.partial(_fused_graph_kernel, valid_rows=B,
                               tiles_per_core=tiles_per_core, tile_b=TB)

    partial_sums = pl.pallas_call(
        kernel,
        out_shape=jax.ShapeDtypeStruct((num_partials * 8, FF_pad), jnp.float32),
        grid_spec=pltpu.PrefetchScalarGridSpec(
            num_scalar_prefetch=0,
            grid=(num_partials, tiles_per_core),
            in_specs=[
                pl.BlockSpec((TB, D), lambda p, i: (p * tiles_per_core + i, 0)),
                pl.BlockSpec((D, FF_pad), lambda p, i: (0, 0)),       # W1 (resident)
                pl.BlockSpec((1, FF_pad), lambda p, i: (0, 0)),       # b1 (resident)
                pl.BlockSpec((FF_pad, FF_pad), lambda p, i: (0, 0)),  # W2 (resident)
                pl.BlockSpec((1, FF_pad), lambda p, i: (0, 0)),       # b2 (resident)
                pl.BlockSpec((FF_pad, FF_pad), lambda p, i: (0, 0)),  # W3 (resident)
                pl.BlockSpec((1, FF_pad), lambda p, i: (0, 0)),       # b3 (resident)
            ],
            # Constant over the batch axis -> resident accumulator; indexed by the
            # parallel "partial" axis so megacore sharding is preserved.
            out_specs=pl.BlockSpec((8, FF_pad), lambda p, i: (p, 0)),
        ),
        compiler_params=pltpu.CompilerParams(
            dimension_semantics=("parallel", "arbitrary"),
            vmem_limit_bytes=32 * 1024 * 1024,
        ),
    )(x, W1_p, b1_p, W2_p, b2_p, W3_p, b3_p)

    # Tiny finalize: sum the (<=16, FF_pad) partial rows, slice real columns, mean.
    graph_mean = (jnp.sum(partial_sums, axis=0)[:FF] / B).reshape(F_, F_)
    if not broadcast_to_batch:
        return graph_mean
    return jnp.broadcast_to(graph_mean[None], (B, F_, F_))


def _reference(feature_emb, params):
    """Pure-JAX f32 reference mirroring the PyTorch forward."""
    W1, b1, W2, b2, W3, b3 = params
    F_ = W1.shape[0]
    B = feature_emb.shape[0]
    fields = []
    for i in range(F_):
        oh = jnp.broadcast_to(jax.nn.one_hot(i, F_, dtype=feature_emb.dtype)[None], (B, F_))
        x = jnp.concatenate([feature_emb, oh], axis=1)
        h = jnp.maximum(x @ W1[i] + b1[i, 0], 0.0)
        h = jnp.maximum(h @ W2[i] + b2[i, 0], 0.0)
        fields.append(h @ W3[i] + b3[i, 0])
    graph = jnp.stack(fields, axis=1)            # (B, F, F)
    graph = jnp.mean(graph, axis=0)              # (F, F)
    return jnp.broadcast_to(graph[None], (B, F_, F_))


def init_params(key, num_item_fields, num_fields, embedding_dim):
    D = num_item_fields * embedding_dim
    Din = D + num_fields
    ks = jax.random.split(key, 6)
    scale = 0.1
    W1 = scale * jax.random.normal(ks[0], (num_fields, Din, num_fields), jnp.float32)
    b1 = scale * jax.random.normal(ks[1], (num_fields, 1, num_fields), jnp.float32)
    W2 = scale * jax.random.normal(ks[2], (num_fields, num_fields, num_fields), jnp.float32)
    b2 = scale * jax.random.normal(ks[3], (num_fields, 1, num_fields), jnp.float32)
    W3 = scale * jax.random.normal(ks[4], (num_fields, num_fields, num_fields), jnp.float32)
    b3 = scale * jax.random.normal(ks[5], (num_fields, 1, num_fields), jnp.float32)
    return (W1, b1, W2, b2, W3, b3)


if __name__ == "__main__":
    num_item_fields = 4
    embedding_dim = 8
    num_fields = 8
    batch = 8

    key = jax.random.PRNGKey(0)
    kx, kp = jax.random.split(key)
    feature_emb = jax.random.normal(kx, (batch, num_item_fields * embedding_dim), jnp.float32)
    params = init_params(kp, num_item_fields, num_fields, embedding_dim)

    # One-time repacking (off the per-forward hot path).
    repacked, meta = repack_params(params)

    graph = generate_graph(feature_emb, repacked, meta)
    graph = jax.block_until_ready(graph)

    ref = _reference(feature_emb, params)
    assert graph.shape == (batch, num_fields, num_fields)
    # bf16 MXU operands with f32 accumulation -> loosened tolerance vs f32 reference.
    assert jnp.allclose(graph, ref, atol=5e-2, rtol=5e-2)

    print("KERNEL_OK")
</pallas_src>

<mosaic_0001>
module attributes {stable_mosaic.version = 11 : i64} {
  func.func @_fused_graph_kernel(%arg0: i32, %arg1: i32, %arg2: memref<8x32xbf16, #tpu.memory_space<vmem>>, %arg3: memref<32x128xbf16, #tpu.memory_space<vmem>>, %arg4: memref<1x128xf32, #tpu.memory_space<vmem>>, %arg5: memref<128x128xbf16, #tpu.memory_space<vmem>>, %arg6: memref<1x128xf32, #tpu.memory_space<vmem>>, %arg7: memref<128x128xbf16, #tpu.memory_space<vmem>>, %arg8: memref<1x128xf32, #tpu.memory_space<vmem>>, %arg9: memref<8x128xf32, #tpu.memory_space<vmem>>) attributes {dimension_semantics = [#tpu.dimension_semantics<parallel>, #tpu.dimension_semantics<arbitrary>], iteration_bounds = array<i64: 1, 1>, scalar_prefetch = 0 : i64, scratch_operands = 0 : i64, tpu.core_type = #tpu.core_type<tc>, window_params = [{transform_indices = @transform_0, window_bounds = array<i64: 8, 32>}, {pipeline_mode = #tpu.pipeline_mode<synchronous>, transform_indices = @transform_1, window_bounds = array<i64: 32, 128>}, {pipeline_mode = #tpu.pipeline_mode<synchronous>, transform_indices = @transform_2, window_bounds = array<i64: 1, 128>}, {pipeline_mode = #tpu.pipeline_mode<synchronous>, transform_indices = @transform_3, window_bounds = array<i64: 128, 128>}, {pipeline_mode = #tpu.pipeline_mode<synchronous>, transform_indices = @transform_4, window_bounds = array<i64: 1, 128>}, {pipeline_mode = #tpu.pipeline_mode<synchronous>, transform_indices = @transform_5, window_bounds = array<i64: 128, 128>}, {pipeline_mode = #tpu.pipeline_mode<synchronous>, transform_indices = @transform_6, window_bounds = array<i64: 1, 128>}, {transform_indices = @transform_7, window_bounds = array<i64: 8, 128>}]} {
    %c0_i32 = arith.constant 0 : i32
    %0 = arith.cmpi eq, %arg1, %c0_i32 : i32
    %1 = arith.extui %0 : i1 to i32
    %c0_i32_0 = arith.constant 0 : i32
    %2 = arith.cmpi ne, %1, %c0_i32_0 : i32
    scf.if %2 {
      %cst_25 = arith.constant 0.000000e+00 : f32
      %40 = vector.broadcast %cst_25 : f32 to vector<8x128xf32>
      %c0_26 = arith.constant 0 : index
      %c0_27 = arith.constant 0 : index
      %41 = vector.load %arg9[%c0_26, %c0_27] : memref<8x128xf32, #tpu.memory_space<vmem>>, vector<8x128xf32>
      tpu.vector_store %arg9[%c0_26, %c0_27], %40 {strides = array<i32>} : memref<8x128xf32, #tpu.memory_space<vmem>>, vector<8x128xf32>,
    } else {
    }
    %c0 = arith.constant 0 : index
    %c0_1 = arith.constant 0 : index
    %3 = vector.load %arg2[%c0, %c0_1] : memref<8x32xbf16, #tpu.memory_space<vmem>>, vector<8x32xbf16>
    %c0_2 = arith.constant 0 : index
    %c0_3 = arith.constant 0 : index
    %4 = vector.load %arg3[%c0_2, %c0_3] : memref<32x128xbf16, #tpu.memory_space<vmem>>, vector<32x128xbf16>
    %cst = arith.constant dense<0.000000e+00> : vector<8x128xf32>
    %5 = tpu.matmul %3, %4, %cst {dimension_numbers = #tpu.dot_dimension_numbers<[1], [0], [0], [1], [0, 0, 1, 1], [], []>} : vector<8x32xbf16>, vector<32x128xbf16>, vector<8x128xf32> -> vector<8x128xf32>
    %c0_4 = arith.constant 0 : index
    %c0_5 = arith.constant 0 : index
    %6 = vector.load %arg4[%c0_4, %c0_5] : memref<1x128xf32, #tpu.memory_space<vmem>>, vector<1x128xf32>
    %7 = vector.broadcast %6 : vector<1x128xf32> to vector<8x128xf32>
    %8 = arith.addf %5, %7 : vector<8x128xf32>
    %cst_6 = arith.constant 0.000000e+00 : f32
    %9 = vector.broadcast %cst_6 : f32 to vector<8x128xf32>
    %10 = arith.maximumf %8, %9 : vector<8x128xf32>
    %11 = arith.truncf %10 : vector<8x128xf32> to vector<8x128xbf16>
    %c0_7 = arith.constant 0 : index
    %c0_8 = arith.constant 0 : index
    %12 = vector.load %arg5[%c0_7, %c0_8] : memref<128x128xbf16, #tpu.memory_space<vmem>>, vector<128x128xbf16>
    %cst_9 = arith.constant dense<0.000000e+00> : vector<8x128xf32>
    %13 = tpu.matmul %11, %12, %cst_9 {dimension_numbers = #tpu.dot_dimension_numbers<[1], [0], [0], [1], [0, 0, 1, 1], [], []>} : vector<8x128xbf16>, vector<128x128xbf16>, vector<8x128xf32> -> vector<8x128xf32>
    %c0_10 = arith.constant 0 : index
    %c0_11 = arith.constant 0 : index
    %14 = vector.load %arg6[%c0_10, %c0_11] : memref<1x128xf32, #tpu.memory_space<vmem>>, vector<1x128xf32>
    %15 = vector.broadcast %14 : vector<1x128xf32> to vector<8x128xf32>
    %16 = arith.addf %13, %15 : vector<8x128xf32>
    %cst_12 = arith.constant 0.000000e+00 : f32
    %17 = vector.broadcast %cst_12 : f32 to vector<8x128xf32>
    %18 = arith.maximumf %16, %17 : vector<8x128xf32>
    %19 = arith.truncf %18 : vector<8x128xf32> to vector<8x128xbf16>
    %c0_13 = arith.constant 0 : index
    %c0_14 = arith.constant 0 : index
    %20 = vector.load %arg7[%c0_13, %c0_14] : memref<128x128xbf16, #tpu.memory_space<vmem>>, vector<128x128xbf16>
    %cst_15 = arith.constant dense<0.000000e+00> : vector<8x128xf32>
    %21 = tpu.matmul %19, %20, %cst_15 {dimension_numbers = #tpu.dot_dimension_numbers<[1], [0], [0], [1], [0, 0, 1, 1], [], []>} : vector<8x128xbf16>, vector<128x128xbf16>, vector<8x128xf32> -> vector<8x128xf32>
    %c0_16 = arith.constant 0 : index
    %c0_17 = arith.constant 0 : index
    %22 = vector.load %arg8[%c0_16, %c0_17] : memref<1x128xf32, #tpu.memory_space<vmem>>, vector<1x128xf32>
    %23 = vector.broadcast %22 : vector<1x128xf32> to vector<8x128xf32>
    %24 = arith.addf %21, %23 : vector<8x128xf32>
    %c1_i32 = arith.constant 1 : i32
    %25 = arith.muli %arg0, %c1_i32 : i32
    %26 = arith.addi %25, %arg1 : i32
    %c8_i32 = arith.constant 8 : i32
    %27 = arith.muli %26, %c8_i32 : i32
    %28 = tpu.iota {dimensions = array<i32: 0>} : vector<8x128xi32>
    %29 = vector.broadcast %27 : i32 to vector<8x128xi32>
    %30 = arith.addi %29, %28 : vector<8x128xi32>
    %c8_i32_18 = arith.constant 8 : i32
    %31 = vector.broadcast %c8_i32_18 : i32 to vector<8x128xi32>
    %32 = arith.cmpi slt, %30, %31 : vector<8x128xi32>
    %cst_19 = arith.constant 0.000000e+00 : f32
    %33 = vector.broadcast %cst_19 : f32 to vector<8x128xf32>
    %34 = arith.select %32, %24, %33 : vector<8x128xi1>, vector<8x128xf32>
    %c0_20 = arith.constant 0 : index
    %c0_21 = arith.constant 0 : index
    %35 = vector.load %arg9[%c0_20, %c0_21] : memref<8x128xf32, #tpu.memory_space<vmem>>, vector<8x128xf32>
    %36 = vector.shape_cast %34 : vector<8x128xf32> to vector<1x8x128xf32>
    %cst_22 = arith.constant dense<0.000000e+00> : vector<8x128xf32>
    %37 = vector.multi_reduction <add>, %36, %cst_22 [0] : vector<1x8x128xf32> to vector<8x128xf32>
    %38 = arith.addf %35, %37 : vector<8x128xf32>
    %c0_23 = arith.constant 0 : index
    %c0_24 = arith.constant 0 : index
    %39 = vector.load %arg9[%c0_23, %c0_24] : memref<8x128xf32, #tpu.memory_space<vmem>>, vector<8x128xf32>
    tpu.vector_store %arg9[%c0_23, %c0_24], %38 {strides = array<i32>} : memref<8x128xf32, #tpu.memory_space<vmem>>, vector<8x128xf32>,
    return
  }
  func.func @transform_0(%arg0: i32, %arg1: i32) -> (i32, i32) {
    %c1_i32 = arith.constant 1 : i32
    %0 = arith.muli %arg0, %c1_i32 : i32
    %1 = arith.addi %0, %arg1 : i32
    %c0_i32 = arith.constant 0 : i32
    %c0_i32_0 = arith.constant 0 : i32
    return %1, %c0_i32 : i32, i32
  }
  func.func @transform_1(%arg0: i32, %arg1: i32) -> (i32, i32) {
    %c0_i32 = arith.constant 0 : i32
    %c0_i32_0 = arith.constant 0 : i32
    %c0_i32_1 = arith.constant 0 : i32
    return %c0_i32, %c0_i32_0 : i32, i32
  }
  func.func @transform_2(%arg0: i32, %arg1: i32) -> (i32, i32) {
    %c0_i32 = arith.constant 0 : i32
    %c0_i32_0 = arith.constant 0 : i32
    %c0_i32_1 = arith.constant 0 : i32
    return %c0_i32, %c0_i32_0 : i32, i32
  }
  func.func @transform_3(%arg0: i32, %arg1: i32) -> (i32, i32) {
    %c0_i32 = arith.constant 0 : i32
    %c0_i32_0 = arith.constant 0 : i32
    %c0_i32_1 = arith.constant 0 : i32
    return %c0_i32, %c0_i32_0 : i32, i32
  }
  func.func @transform_4(%arg0: i32, %arg1: i32) -> (i32, i32) {
    %c0_i32 = arith.constant 0 : i32
    %c0_i32_0 = arith.constant 0 : i32
    %c0_i32_1 = arith.constant 0 : i32
    return %c0_i32, %c0_i32_0 : i32, i32
  }
  func.func @transform_5(%arg0: i32, %arg1: i32) -> (i32, i32) {
    %c0_i32 = arith.constant 0 : i32
    %c0_i32_0 = arith.constant 0 : i32
    %c0_i32_1 = arith.constant 0 : i32
    return %c0_i32, %c0_i32_0 : i32, i32
  }
  func.func @transform_6(%arg0: i32, %arg1: i32) -> (i32, i32) {
    %c0_i32 = arith.constant 0 : i32
    %c0_i32_0 = arith.constant 0 : i32
    %c0_i32_1 = arith.constant 0 : i32
    return %c0_i32, %c0_i32_0 : i32, i32
  }
  func.func @transform_7(%arg0: i32, %arg1: i32) -> (i32, i32) {
    %c0_i32 = arith.constant 0 : i32
    %c0_i32_0 = arith.constant 0 : i32
    return %arg0, %c0_i32 : i32, i32
  }
}

</mosaic_0001>

<llo_original>
// kernel: tpu_custom_call.1
$region0: #{tpu_custom_call.1}
  #allocation0 [shape = 'u32[]', space=smem, size = 0x4, offset = 0x4, fixed_abs, tag = 'smem constant byte address 0x4 - core index']
  #allocation1 [shape = 'u32[144,128]{1,0:T(1,128)}', space=vmem, size = 0x12000, scoped, tag = 'internal scratch']
  %s0 = inlined_call_operand.hbm [shape: bf16[8,32], index: 0, kind: input, shape index: {}]
  %s1 = inlined_call_operand.hbm [shape: bf16[32,128], index: 1, kind: input, shape index: {}]
  %s2 = inlined_call_operand.vmem [shape: f32[1,128], index: 2, kind: input, shape index: {}]
  %s3 = inlined_call_operand.hbm [shape: bf16[128,128], index: 3, kind: input, shape index: {}]
  %s4 = inlined_call_operand.vmem [shape: f32[1,128], index: 4, kind: input, shape index: {}]
  %s5 = inlined_call_operand.hbm [shape: bf16[128,128], index: 5, kind: input, shape index: {}]
  %s6 = inlined_call_operand.vmem [shape: f32[1,128], index: 6, kind: input, shape index: {}]
  %s7 = inlined_call_operand.hbm [shape: f32[8,128], index: 7, kind: output, shape index: {}]
  %s8 = sld [smem:[#allocation0]]
  $region58: #{tpu_custom_call.1} parent=0
    _
  %s10 = ssub.s32 1, %s8
  %s11 = scalar_select 0, %s10, %s8
  $region1: #{tpu_custom_call.1} parent=0
    #allocation2 [shape = 'u8[2048]{0}', space=vmem, size = 0x800, scoped, tag = 'input window, operand 0, single buffered']
    #allocation3 [shape = 's32[1]{0}', space=sflag, size = 0x4, scoped, tag = 'scoped memory for tpu_custom_call.1']
    #allocation4 [shape = 's32[1]{0}', space=sflag, size = 0x4, scoped, tag = 'scoped memory for tpu_custom_call.1']
    #allocation5 [shape = 'u8[8192]{0}', space=vmem, size = 0x2000, scoped, tag = 'input window, operand 1, single buffered']
    #allocation6 [shape = 's32[1]{0}', space=sflag, size = 0x4, scoped, tag = 'scoped memory for tpu_custom_call.1']
    #allocation7 [shape = 'u8[32768]{0}', space=vmem, size = 0x8000, scoped, tag = 'input window, operand 3, single buffered']
    #allocation8 [shape = 'u8[32768]{0}', space=vmem, size = 0x8000, scoped, tag = 'input window, operand 5, single buffered']
    #allocation9 [shape = 's32[1]{0}', space=sflag, size = 0x4, scoped, tag = 'scoped memory for tpu_custom_call.1']
    #allocation10 [shape = 'u8[4096]{0}', space=vmem, size = 0x1000, scoped, tag = 'output window, operand 0, single buffered']
    %12 = vsyncpa [#allocation3], 0
    %13 = vsyncpa [#allocation6], 0
    %14 = vsyncpa [#allocation9], 0
    %15 = vsyncpa [#allocation4], 0
    // Predicated region
    $region2: #{tpu_custom_call.1} parent=1 // pred_check
      _
    $region3: #{tpu_custom_call.1} parent=1 // pred_check_branch
      %17 = sbr.rel (0) target = $region5
    $region4: #{tpu_custom_call.1} parent=1 // pred_region
      %s18 = sadd.s32 0, 0
      %s20 = ssub.s32 64, 64
      %21 = vsyncadd [#allocation3], %s20
      %s22 = smul.addr %s18, 64
      %s23 = scalar_lea.hbm %s0, %s22
      %s25 = sshll.u32 [#allocation2], 4
      %s26 = int_to_ptr.vmem [resolvable:$true] %s25
      %28 = dma.hbm_to_vmem [thread:$0]  %s23, 64, %s26, [#allocation3]
    $region5: #{tpu_custom_call.1} parent=1 // pred_fallthru
      _
    // Predicated region
    $region6: #{tpu_custom_call.1} parent=1 // pred_check
      _
    $region7: #{tpu_custom_call.1} parent=1 // pred_check_branch
      %30 = sbr.rel (0) target = $region9
    $region8: #{tpu_custom_call.1} parent=1 // pred_region
      %s32 = ssub.s32 256, 256
      %33 = vsyncadd [#allocation6], %s32
      %s34 = sshll.u32 [#allocation5], 4
      %s35 = int_to_ptr.vmem [resolvable:$true] %s34
      %40 = dma.hbm_to_vmem [thread:$0]  %s1, 256, %s35, [#allocation6], 64, 64, 4
    $region9: #{tpu_custom_call.1} parent=1 // pred_fallthru
      _
    // Predicated region
    $region10: #{tpu_custom_call.1} parent=1 // pred_check
      _
    $region11: #{tpu_custom_call.1} parent=1 // pred_check_branch
      %42 = sbr.rel (0) target = $region13
    $region12: #{tpu_custom_call.1} parent=1 // pred_region
      _
    $region13: #{tpu_custom_call.1} parent=1 // pred_fallthru
      _
    // Predicated region
    $region14: #{tpu_custom_call.1} parent=1 // pred_check
      _
    $region15: #{tpu_custom_call.1} parent=1 // pred_check_branch
      %44 = sbr.rel (0) target = $region17
    $region16: #{tpu_custom_call.1} parent=1 // pred_region
      %s46 = ssub.s32 1024, 1024
      %47 = vsyncadd [#allocation6], %s46
      %s48 = sshll.u32 [#allocation7], 4
      %s49 = int_to_ptr.vmem [resolvable:$true] %s48
      %54 = dma.hbm_to_vmem [thread:$0]  %s3, 1024, %s49, [#allocation6], 64, 64, 4
    $region17: #{tpu_custom_call.1} parent=1 // pred_fallthru
      _
    // Predicated region
    $region18: #{tpu_custom_call.1} parent=1 // pred_check
      _
    $region19: #{tpu_custom_call.1} parent=1 // pred_check_branch
      %56 = sbr.rel (0) target = $region21
    $region20: #{tpu_custom_call.1} parent=1 // pred_region
      _
    $region21: #{tpu_custom_call.1} parent=1 // pred_fallthru
      _
    // Predicated region
    $region22: #{tpu_custom_call.1} parent=1 // pred_check
      _
    $region23: #{tpu_custom_call.1} parent=1 // pred_check_branch
      %58 = sbr.rel (0) target = $region25
    $region24: #{tpu_custom_call.1} parent=1 // pred_region
      %s60 = ssub.s32 1024, 1024
      %61 = vsyncadd [#allocation9], %s60
      %s62 = sshll.u32 [#allocation8], 4
      %s63 = int_to_ptr.vmem [resolvable:$true] %s62
      %68 = dma.hbm_to_vmem [thread:$0]  %s5, 1024, %s63, [#allocation9], 64, 64, 4
    $region25: #{tpu_custom_call.1} parent=1 // pred_fallthru
      _
    // Predicated region
    $region26: #{tpu_custom_call.1} parent=1 // pred_check
      _
    $region27: #{tpu_custom_call.1} parent=1 // pred_check_branch
      %70 = sbr.rel (0) target = $region29
    $region28: #{tpu_custom_call.1} parent=1 // pred_region
      _
    $region29: #{tpu_custom_call.1} parent=1 // pred_fallthru
      _
    // Predicated region
    $region30: #{tpu_custom_call.1} parent=1 // pred_check
      _
    $region31: #{tpu_custom_call.1} parent=1 // pred_check_branch
      %72 = sbr.rel (0) target = $region33
    $region32: #{tpu_custom_call.1} parent=1 // pred_region
      %73 = dma.done [#allocation3], 64
    $region33: #{tpu_custom_call.1} parent=1 // pred_fallthru
      _
    // Predicated region
    $region34: #{tpu_custom_call.1} parent=1 // pred_check
      _
    $region35: #{tpu_custom_call.1} parent=1 // pred_check_branch
      %75 = sbr.rel (0) target = $region37
    $region36: #{tpu_custom_call.1} parent=1 // pred_region
      %76 = dma.done [#allocation6], 256
    $region37: #{tpu_custom_call.1} parent=1 // pred_fallthru
      _
    // Predicated region
    $region38: #{tpu_custom_call.1} parent=1 // pred_check
      _
    $region39: #{tpu_custom_call.1} parent=1 // pred_check_branch
      %78 = sbr.rel (0) target = $region41
    $region40: #{tpu_custom_call.1} parent=1 // pred_region
      %79 = dma.done [#allocation6], 1024
    $region41: #{tpu_custom_call.1} parent=1 // pred_fallthru
      _
    // Predicated region
    $region42: #{tpu_custom_call.1} parent=1 // pred_check
      _
    $region43: #{tpu_custom_call.1} parent=1 // pred_check_branch
      %81 = sbr.rel (0) target = $region45
    $region44: #{tpu_custom_call.1} parent=1 // pred_region
      %82 = dma.done [#allocation9], 1024
    $region45: #{tpu_custom_call.1} parent=1 // pred_fallthru
      _
    %s83 = sadd.s32 0, 0
    %p85 = scmp.eq.s32.totalorder 0, 0
    // Predicated region
    $region46: #{tpu_custom_call.1} parent=1 // pred_check
      %p86 = pneg %p85
    $region47: #{tpu_custom_call.1} parent=1 // pred_check_branch
      %88 = sbr.rel (%p86) target = $region49
    $region48: #{tpu_custom_call.1} parent=1 // pred_region
      %89 = vst [vmem:[#allocation10] sm:$0xff] 0.0
    $region49: #{tpu_custom_call.1} parent=1 // pred_fallthru
      _
    %v90 = vld [vmem:[#allocation2] sm:$0xf]
    %v91 = vld [vmem:[#allocation5] sm:$0xf]
    %v92 = vld [vmem:[#allocation5 + $0x4] sm:$0xf]
    %v93 = vld [vmem:[#allocation5 + $0x8] sm:$0xf]
    %v94 = vld [vmem:[#allocation5 + $0xc] sm:$0xf]
    %v95 = vld [vmem:[%s2] sm:$0x1]
    %v97 = vlaneseq
    %v98 = vshrl.u32 %v97, 7
    %v99 = vsub.s32 0, %v98
    %v100 = vrot.slane %v95, %v99
    %v106 = vunpack.c.l.b16 %v91
    %v107 = vunpack.c.l.b16 %v92
    %v108 = vunpack.c.l.b16 %v93
    %v109 = vunpack.c.l.b16 %v94
    %v110 = vpack.c.b16 %v107, %v106
    %v111 = vpack.c.b16 %v109, %v108
    %vm114 = vcmask 261120
    %v116 = vsel %vm114, %v90, 0
    %118 = vmatprep.subr.bf16.mxu0 0
    %119 = vmatpush1.bf16.msra.mxu0 %v110
    %120 = vmatprep.subr.bf16.mxu0 0
    %121 = vmatpush1.bf16.msra.mxu0 %v111
    %122 = vmatprep.subr.bf16.mxu0 0
    %123 = vmatpush1.bf16.msra.mxu0 0
    %124 = vmatprep.subr.bf16.mxu0 0
    %125 = vmatpush1.bf16.msra.mxu0 0
    %126 = vmatprep.subr.bf16.mxu0 0
    %127 = vmatpush1.bf16.msra.mxu0 0
    %128 = vmatprep.subr.bf16.mxu0 0
    %129 = vmatpush1.bf16.msra.mxu0 0
    %130 = vmatprep.subr.bf16.mxu0 0
    %131 = vmatpush1.bf16.msra.mxu0 0
    %132 = vmatprep.subr.bf16.mxu0 0
    %133 = vmatpush1.bf16.msra.mxu0 0
    %134 = vmatprep.subr.bf16.mxu0 0
    %135 = vmatpush1.bf16.msra.mxu0 0
    %136 = vmatprep.subr.bf16.mxu0 0
    %137 = vmatpush1.bf16.msra.mxu0 0
    %138 = vmatprep.subr.bf16.mxu0 0
    %139 = vmatpush1.bf16.msra.mxu0 0
    %140 = vmatprep.subr.bf16.mxu0 0
    %141 = vmatpush1.bf16.msra.mxu0 0
    %142 = vmatprep.subr.bf16.mxu0 0
    %143 = vmatpush1.bf16.msra.mxu0 0
    %144 = vmatprep.subr.bf16.mxu0 0
    %145 = vmatpush1.bf16.msra.mxu0 0
    %146 = vmatprep.subr.bf16.mxu0 0
    %147 = vmatpush1.bf16.msra.mxu0 0
    %148 = vmatprep.subr.bf16.mxu0 0
    %149 = vmatpush1.bf16.msra.mxu0 0
    %150 = vmatprep.mubr.bf16.mxu0 0
    %151 = vmatmul.mubr.bf16.gmra.mrb[0].mxu0 %v116
    %v152 = vpop.f32.mrb[0].mxu0
    %v153 = vadd.f32 %v100, %v152
    %v154 = vpop.f32.mrb[0].mxu0
    %v155 = vpop.f32.mrb[0].mxu0
    %v156 = vpop.f32.mrb[0].mxu0
    %157 = vdwg.mxu0
    %v158 = vmax.f32 %v153, 0.0
    %v159 = vpack.c.bf16 %v158, %v158
    %v160 = vld [vmem:[#allocation7] sm:$0xf]
    %v161 = vld [vmem:[#allocation7 + $0x4] sm:$0xf]
    %v162 = vld [vmem:[#allocation7 + $0x8] sm:$0xf]
    %v163 = vld [vmem:[#allocation7 + $0xc] sm:$0xf]
    %v164 = vld [vmem:[#allocation7 + $0x10] sm:$0xf]
    %v165 = vld [vmem:[#allocation7 + $0x14] sm:$0xf]
    %v166 = vld [vmem:[#allocation7 + $0x18] sm:$0xf]
    %v167 = vld [vmem:[#allocation7 + $0x1c] sm:$0xf]
    %v168 = vld [vmem:[#allocation7 + $0x20] sm:$0xf]
    %v169 = vld [vmem:[#allocation7 + $0x24] sm:$0xf]
    %v170 = vld [vmem:[#allocation7 + $0x28] sm:$0xf]
    %v171 = vld [vmem:[#allocation7 + $0x2c] sm:$0xf]
    %v172 = vld [vmem:[#allocation7 + $0x30] sm:$0xf]
    %v173 = vld [vmem:[#allocation7 + $0x34] sm:$0xf]
    %v174 = vld [vmem:[#allocation7 + $0x38] sm:$0xf]
    %v175 = vld [vmem:[#allocation7 + $0x3c] sm:$0xf]
    %v176 = vld [vmem:[%s4] sm:$0x1]
    %v178 = vlaneseq
    %v179 = vshrl.u32 %v178, 7
    %v180 = vsub.s32 0, %v179
    %v181 = vrot.slane %v176, %v180
    %v199 = vunpack.c.l.b16 %v160
    %v200 = vunpack.c.l.b16 %v161
    %v201 = vunpack.c.l.b16 %v162
    %v202 = vunpack.c.l.b16 %v163
    %v203 = vunpack.c.l.b16 %v164
    %v204 = vunpack.c.l.b16 %v165
    %v205 = vunpack.c.l.b16 %v166
    %v206 = vunpack.c.l.b16 %v167
    %v207 = vunpack.c.l.b16 %v168
    %v208 = vunpack.c.l.b16 %v169
    %v209 = vunpack.c.l.b16 %v170
    %v210 = vunpack.c.l.b16 %v171
    %v211 = vunpack.c.l.b16 %v172
    %v212 = vunpack.c.l.b16 %v173
    %v213 = vunpack.c.l.b16 %v174
    %v214 = vunpack.c.l.b16 %v175
    %v215 = vpack.c.b16 %v200, %v199
    %v216 = vpack.c.b16 %v202, %v201
    %v217 = vpack.c.b16 %v204, %v203
    %v218 = vpack.c.b16 %v206, %v205
    %v219 = vpack.c.b16 %v208, %v207
    %v220 = vpack.c.b16 %v210, %v209
    %v221 = vpack.c.b16 %v212, %v211
    %v222 = vpack.c.b16 %v214, %v213
    %231 = vmatprep.subr.bf16.mxu0 0
    %232 = vmatpush1.bf16.msra.mxu0 %v215
    %233 = vmatprep.subr.bf16.mxu0 0
    %234 = vmatpush1.bf16.msra.mxu0 %v216
    %235 = vmatprep.subr.bf16.mxu0 0
    %236 = vmatpush1.bf16.msra.mxu0 %v217
    %237 = vmatprep.subr.bf16.mxu0 0
    %238 = vmatpush1.bf16.msra.mxu0 %v218
    %239 = vmatprep.subr.bf16.mxu0 0
    %240 = vmatpush1.bf16.msra.mxu0 %v219
    %241 = vmatprep.subr.bf16.mxu0 0
    %242 = vmatpush1.bf16.msra.mxu0 %v220
    %243 = vmatprep.subr.bf16.mxu0 0
    %244 = vmatpush1.bf16.msra.mxu0 %v221
    %245 = vmatprep.subr.bf16.mxu0 0
    %246 = vmatpush1.bf16.msra.mxu0 %v222
    %247 = vmatprep.subr.bf16.mxu0 0
    %248 = vmatpush1.bf16.msra.mxu0 0
    %249 = vmatprep.subr.bf16.mxu0 0
    %250 = vmatpush1.bf16.msra.mxu0 0
    %251 = vmatprep.subr.bf16.mxu0 0
    %252 = vmatpush1.bf16.msra.mxu0 0
    %253 = vmatprep.subr.bf16.mxu0 0
    %254 = vmatpush1.bf16.msra.mxu0 0
    %255 = vmatprep.subr.bf16.mxu0 0
    %256 = vmatpush1.bf16.msra.mxu0 0
    %257 = vmatprep.subr.bf16.mxu0 0
    %258 = vmatpush1.bf16.msra.mxu0 0
    %259 = vmatprep.subr.bf16.mxu0 0
    %260 = vmatpush1.bf16.msra.mxu0 0
    %261 = vmatprep.subr.bf16.mxu0 0
    %262 = vmatpush1.bf16.msra.mxu0 0
    %263 = vmatprep.mubr.bf16.mxu0 0
    %264 = vmatmul.mubr.bf16.gmra.mrb[0].mxu0 %v159
    %v265 = vpop.f32.mrb[0].mxu0
    %v266 = vadd.f32 %v181, %v265
    %v267 = vpop.f32.mrb[0].mxu0
    %v268 = vpop.f32.mrb[0].mxu0
    %v269 = vpop.f32.mrb[0].mxu0
    %270 = vdwg.mxu0
    %v271 = vmax.f32 %v266, 0.0
    %v272 = vpack.c.bf16 %v271, %v271
    %v273 = vld [vmem:[#allocation8] sm:$0xf]
    %v274 = vld [vmem:[#allocation8 + $0x4] sm:$0xf]
    %v275 = vld [vmem:[#allocation8 + $0x8] sm:$0xf]
    %v276 = vld [vmem:[#allocation8 + $0xc] sm:$0xf]
    %v277 = vld [vmem:[#allocation8 + $0x10] sm:$0xf]
    %v278 = vld [vmem:[#allocation8 + $0x14] sm:$0xf]
    %v279 = vld [vmem:[#allocation8 + $0x18] sm:$0xf]
    %v280 = vld [vmem:[#allocation8 + $0x1c] sm:$0xf]
    %v281 = vld [vmem:[#allocation8 + $0x20] sm:$0xf]
    %v282 = vld [vmem:[#allocation8 + $0x24] sm:$0xf]
    %v283 = vld [vmem:[#allocation8 + $0x28] sm:$0xf]
    %v284 = vld [vmem:[#allocation8 + $0x2c] sm:$0xf]
    %v285 = vld [vmem:[#allocation8 + $0x30] sm:$0xf]
    %v286 = vld [vmem:[#allocation8 + $0x34] sm:$0xf]
    %v287 = vld [vmem:[#allocation8 + $0x38] sm:$0xf]
    %v288 = vld [vmem:[#allocation8 + $0x3c] sm:$0xf]
    %v289 = vld [vmem:[%s6] sm:$0x1]
    %v291 = vlaneseq
    %v292 = vshrl.u32 %v291, 7
    %v293 = vsub.s32 0, %v292
    %v294 = vrot.slane %v289, %v293
    %v312 = vunpack.c.l.b16 %v273
    %v313 = vunpack.c.l.b16 %v274
    %v314 = vunpack.c.l.b16 %v275
    %v315 = vunpack.c.l.b16 %v276
    %v316 = vunpack.c.l.b16 %v277
    %v317 = vunpack.c.l.b16 %v278
    %v318 = vunpack.c.l.b16 %v279
    %v319 = vunpack.c.l.b16 %v280
    %v320 = vunpack.c.l.b16 %v281
    %v321 = vunpack.c.l.b16 %v282
    %v322 = vunpack.c.l.b16 %v283
    %v323 = vunpack.c.l.b16 %v284
    %v324 = vunpack.c.l.b16 %v285
    %v325 = vunpack.c.l.b16 %v286
    %v326 = vunpack.c.l.b16 %v287
    %v327 = vunpack.c.l.b16 %v288
    %v328 = vpack.c.b16 %v313, %v312
    %v329 = vpack.c.b16 %v315, %v314
    %v330 = vpack.c.b16 %v317, %v316
    %v331 = vpack.c.b16 %v319, %v318
    %v332 = vpack.c.b16 %v321, %v320
    %v333 = vpack.c.b16 %v323, %v322
    %v334 = vpack.c.b16 %v325, %v324
    %v335 = vpack.c.b16 %v327, %v326
    %344 = vmatprep.subr.bf16.mxu0 0
    %345 = vmatpush1.bf16.msra.mxu0 %v328
    %346 = vmatprep.subr.bf16.mxu0 0
    %347 = vmatpush1.bf16.msra.mxu0 %v329
    %348 = vmatprep.subr.bf16.mxu0 0
    %349 = vmatpush1.bf16.msra.mxu0 %v330
    %350 = vmatprep.subr.bf16.mxu0 0
    %351 = vmatpush1.bf16.msra.mxu0 %v331
    %352 = vmatprep.subr.bf16.mxu0 0
    %353 = vmatpush1.bf16.msra.mxu0 %v332
    %354 = vmatprep.subr.bf16.mxu0 0
    %355 = vmatpush1.bf16.msra.mxu0 %v333
    %356 = vmatprep.subr.bf16.mxu0 0
    %357 = vmatpush1.bf16.msra.mxu0 %v334
    %358 = vmatprep.subr.bf16.mxu0 0
    %359 = vmatpush1.bf16.msra.mxu0 %v335
    %360 = vmatprep.subr.bf16.mxu0 0
    %361 = vmatpush1.bf16.msra.mxu0 0
    %362 = vmatprep.subr.bf16.mxu0 0
    %363 = vmatpush1.bf16.msra.mxu0 0
    %364 = vmatprep.subr.bf16.mxu0 0
    %365 = vmatpush1.bf16.msra.mxu0 0
    %366 = vmatprep.subr.bf16.mxu0 0
    %367 = vmatpush1.bf16.msra.mxu0 0
    %368 = vmatprep.subr.bf16.mxu0 0
    %369 = vmatpush1.bf16.msra.mxu0 0
    %370 = vmatprep.subr.bf16.mxu0 0
    %371 = vmatpush1.bf16.msra.mxu0 0
    %372 = vmatprep.subr.bf16.mxu0 0
    %373 = vmatpush1.bf16.msra.mxu0 0
    %374 = vmatprep.subr.bf16.mxu0 0
    %375 = vmatpush1.bf16.msra.mxu0 0
    %376 = vmatprep.mubr.bf16.mxu0 0
    %377 = vmatmul.mubr.bf16.gmra.mrb[0].mxu0 %v272
    %v378 = vpop.f32.mrb[0].mxu0
    %v379 = vadd.f32 %v294, %v378
    %v380 = vpop.f32.mrb[0].mxu0
    %v381 = vpop.f32.mrb[0].mxu0
    %v382 = vpop.f32.mrb[0].mxu0
    %383 = vdwg.mxu0
    %s384 = sadd.s32 0, 0
    %s385 = smul.u32 %s384, 8
    %v386 = vlaneseq
    %v387 = vshrl.u32 %v386, 7
    %v388 = vstv %s385
    %v389 = vadd.s32 %v388, %v387
    %vm390 = vcmp.lt.s32.totalorder %v389, 8
    %v391 = vsel %vm390, %v379, 0.0
    %v392 = vld [vmem:[#allocation10] sm:$0xff]
    %v393 = vadd.f32 %v391, 0.0
    %v394 = vadd.f32 %v392, %v393
    %395 = vst [vmem:[#allocation10] sm:$0xff] %v394
    // Predicated region
    $region50: #{tpu_custom_call.1} parent=1 // pred_check
      _
    $region51: #{tpu_custom_call.1} parent=1 // pred_check_branch
      %397 = sbr.rel (0) target = $region53
    $region52: #{tpu_custom_call.1} parent=1 // pred_region
      %s399 = ssub.s32 128, 128
      %400 = vsyncadd [#allocation4], %s399
      %s402 = sshll.u32 [#allocation10], 4
      %s403 = int_to_ptr.vmem [resolvable:$true] %s402
      %405 = dma.vmem_to_hbm [thread:$0]  %s403, 128, %s7, [#allocation4]
    $region53: #{tpu_custom_call.1} parent=1 // pred_fallthru
      _
    // Predicated region
    $region54: #{tpu_custom_call.1} parent=1 // pred_check
      _
    $region55: #{tpu_custom_call.1} parent=1 // pred_check_branch
      %407 = sbr.rel (0) target = $region57
    $region56: #{tpu_custom_call.1} parent=1 // pred_region
      %408 = dma.done [#allocation4], 128
    $region57: #{tpu_custom_call.1} parent=1 // pred_fallthru
      _
    %409 = vsyncpa [#allocation3], 1
    %410 = vsyncpa [#allocation6], 1
    %411 = vsyncpa [#allocation9], 1
    %412 = vsyncpa [#allocation4], 1

</llo_original>
